<compile_context>
chip_gen: v5e
topology: v5e:2x2
jax: 0.10.0
libtpu: 0.0.40
codegen_flags: <defaults>
</compile_context>

<pallas_src>
import functools

import jax
import jax.numpy as jnp
from jax.experimental import pallas as pl
from jax.experimental.pallas import tpu as pltpu


# ---------------------------------------------------------------------------
# Kernels
# ---------------------------------------------------------------------------
def _film_kernel_fused(dim, film_ref, tobe_ref, wfc_ref, bfc_ref,
                       wout_ref, bout_ref, o_ref):
    """Fused gamma/beta dot: one MXU stream of width 2*dim (dim % 128 == 0)."""
    film = film_ref[...]                                     # (TB, input_dim) bf16
    h = jnp.dot(film, wfc_ref[...],
                preferred_element_type=jnp.float32) + bfc_ref[...]   # (TB, 2*dim) f32
    gamma = h[:, :dim]                                       # lane-aligned slices
    beta = h[:, dim:]
    # FiLM modulation in f32 on the VPU (x / to_be_film never cast to bf16).
    mod = gamma * tobe_ref[...] + beta                       # (TB, dim) f32
    out = jnp.dot(mod.astype(jnp.bfloat16), wout_ref[...],
                  preferred_element_type=jnp.float32) + bout_ref[...]
    o_ref[...] = out.astype(o_ref.dtype)


def _film_kernel_split(film_ref, tobe_ref, wg_ref, wb_ref, bg_ref, bb_ref,
                       wout_ref, bout_ref, o_ref):
    """Split gamma/beta dots (dim not 128-aligned -> avoid lane-axis slicing)."""
    film = film_ref[...]                                     # (TB, input_dim) bf16
    gamma = jnp.dot(film, wg_ref[...],
                    preferred_element_type=jnp.float32) + bg_ref[...]
    # Modulate immediately so only one (TB, dim) f32 temp is live across the
    # beta dot (less vreg/VMEM pressure at large dim / batch_tile).
    mod = gamma * tobe_ref[...]
    beta = jnp.dot(film, wb_ref[...],
                   preferred_element_type=jnp.float32) + bb_ref[...]
    mod = mod + beta
    out = jnp.dot(mod.astype(jnp.bfloat16), wout_ref[...],
                  preferred_element_type=jnp.float32) + bout_ref[...]
    o_ref[...] = out.astype(o_ref.dtype)


# ---------------------------------------------------------------------------
# One-time (load-time) parameter preparation
# ---------------------------------------------------------------------------
def prepare_film_params(w_fc, b_fc, w_out, b_out):
    """Transpose / split / cast / pad weights once, not per forward call.

    w_fc:  (2*dim, input_dim)   torch Linear weight layout
    b_fc:  (2*dim,)
    w_out: (output_dim, dim)
    b_out: (output_dim,)
    """
    two_dim, input_dim = w_fc.shape
    dim = two_dim // 2
    output_dim, dim2 = w_out.shape
    assert dim2 == dim and b_fc.shape == (2 * dim,) and b_out.shape == (output_dim,)

    # Pad output feature axis to a multiple of 128 -> lane-dense unmasked stores.
    out_pad = max(128, -(-output_dim // 128) * 128)
    wout_t = jnp.pad(jnp.transpose(w_out).astype(jnp.bfloat16),
                     ((0, 0), (0, out_pad - output_dim)))           # (dim, out_pad)
    bout = jnp.pad(b_out.astype(jnp.float32),
                   (0, out_pad - output_dim)).reshape(1, out_pad)
    # Padded W_out / b_out columns are exactly zero -> padded output columns are
    # zero and get stripped in the wrapper.

    fused = (dim % 128 == 0)
    if fused:
        wfc_t = jnp.transpose(w_fc).astype(jnp.bfloat16)            # (input_dim, 2*dim)
        bfc = b_fc.astype(jnp.float32).reshape(1, 2 * dim)
        weights = (wfc_t, bfc, wout_t, bout)
    else:
        wg_t = jnp.transpose(w_fc[:dim, :]).astype(jnp.bfloat16)    # (input_dim, dim)
        wb_t = jnp.transpose(w_fc[dim:, :]).astype(jnp.bfloat16)
        bg = b_fc[:dim].astype(jnp.float32).reshape(1, dim)
        bb = b_fc[dim:].astype(jnp.float32).reshape(1, dim)
        weights = (wg_t, wb_t, bg, bb, wout_t, bout)

    return dict(fused=fused, weights=weights, dim=dim, input_dim=input_dim,
                output_dim=output_dim, out_pad=out_pad)


# ---------------------------------------------------------------------------
# Forward wrapper
# ---------------------------------------------------------------------------
def film_forward(x, y, params, *, x_film=False, batch_tile=512,
                 out_dtype=jnp.bfloat16):
    """Pallas FiLM forward.  x: (B, dim), y: (B, input_dim) when x_film=False."""
    if x_film:
        film, to_be_film = x, y
    else:
        film, to_be_film = y, x

    dim = params["dim"]
    input_dim = params["input_dim"]
    output_dim = params["output_dim"]
    out_pad = params["out_pad"]
    weights = params["weights"]

    B = film.shape[0]
    assert film.shape[1] == input_dim and to_be_film.shape[1] == dim

    # ---- batch tiling ------------------------------------------------------
    b_ceil8 = -(-B // 8) * 8
    tb = max(8, min(batch_tile, b_ceil8))
    # Keep >= 2 grid steps so both TensorCores get work on v7x.
    if b_ceil8 >= 16 and -(-b_ceil8 // tb) < 2:
        tb = -(-(b_ceil8 // 2) // 8) * 8
    b_pad = -(-B // tb) * tb
    grid = (b_pad // tb,)

    # Cast / pad only when actually needed (avoid extra full-array HBM passes).
    # TODO(synk): for a production path, feed bf16 `film` directly and choose
    # batch_tile so B % tb == 0, making this block a pure no-op.
    film_p = film if film.dtype == jnp.bfloat16 else film.astype(jnp.bfloat16)
    tobe_p = (to_be_film if to_be_film.dtype == jnp.float32
              else to_be_film.astype(jnp.float32))
    if b_pad != B:
        film_p = jnp.pad(film_p, ((0, b_pad - B), (0, 0)))
        tobe_p = jnp.pad(tobe_p, ((0, b_pad - B), (0, 0)))

    # ---- specs ---------------------------------------------------------------
    act_spec = lambda n: pl.BlockSpec((tb, n), lambda i: (i, 0))
    # Constant operands: whole-array, VMEM-resident, single-buffered.
    res_spec = pl.BlockSpec(memory_space=pltpu.MemorySpace.VMEM)

    # ---- explicit VMEM budget (v5e 16 MiB / v7x 32 MiB scoped defaults bind) --
    resident_bytes = sum(int(w.size) * w.dtype.itemsize for w in weights)
    out_itemsize = jnp.dtype(out_dtype).itemsize
    streamed_bytes = (tb * input_dim * 2          # film (bf16)
                      + tb * dim * 4              # to_be_film (f32)
                      + tb * out_pad * out_itemsize)
    vmem_limit = int(1.5 * (resident_bytes + 2 * streamed_bytes)) + (8 << 20)
    vmem_limit = max(32 << 20, min(96 << 20, vmem_limit))

    flops = 2 * b_pad * (input_dim * 2 * dim + dim * out_pad)
    bytes_accessed = (b_pad * input_dim * 2 + b_pad * dim * 4
                      + b_pad * out_pad * out_itemsize + resident_bytes)

    kernel = (functools.partial(_film_kernel_fused, dim) if params["fused"]
              else _film_kernel_split)

    out_full = pl.pallas_call(
        kernel,
        out_shape=jax.ShapeDtypeStruct((b_pad, out_pad), out_dtype),
        grid=grid,
        in_specs=[act_spec(input_dim), act_spec(dim)] + [res_spec] * len(weights),
        out_specs=pl.BlockSpec((tb, out_pad), lambda i: (i, 0)),
        compiler_params=pltpu.CompilerParams(
            dimension_semantics=("parallel",),
            vmem_limit_bytes=vmem_limit),
        cost_estimate=pl.CostEstimate(flops=flops, transcendentals=0,
                                      bytes_accessed=bytes_accessed),
    )(film_p, tobe_p, *weights)

    return out_full[:B, :output_dim]


# ---------------------------------------------------------------------------
# References
# ---------------------------------------------------------------------------
def _reference_f32(x, y, w_fc, b_fc, w_out, b_out, *, x_film=False):
    """Pure-JAX f32 reference matching the PyTorch module exactly."""
    film, to_be_film = (x, y) if x_film else (y, x)
    h = film @ w_fc.T + b_fc
    dim = to_be_film.shape[1]
    gamma, beta = h[:, :dim], h[:, dim:2 * dim]
    return (gamma * to_be_film + beta) @ w_out.T + b_out


def _reference_matched(x, y, w_fc, b_fc, w_out, b_out, *, x_film=False):
    """Mirrors kernel precision: bf16 MXU operands, f32 accum, f32 modulation."""
    film, to_be_film = (x, y) if x_film else (y, x)
    dim = to_be_film.shape[1]
    f = film.astype(jnp.bfloat16)
    h = jnp.dot(f, w_fc.T.astype(jnp.bfloat16),
                preferred_element_type=jnp.float32) + b_fc
    gamma, beta = h[:, :dim], h[:, dim:2 * dim]
    mod = gamma * to_be_film.astype(jnp.float32) + beta
    return jnp.dot(mod.astype(jnp.bfloat16), w_out.T.astype(jnp.bfloat16),
                   preferred_element_type=jnp.float32) + b_out


# ---------------------------------------------------------------------------
# Self-test
# ---------------------------------------------------------------------------
if __name__ == "__main__":
    def make_case(key, B, input_dim, dim, output_dim):
        kx, ky, kw1, kb1, kw2, kb2 = jax.random.split(key, 6)
        x = jax.random.normal(kx, (B, dim), dtype=jnp.float32)
        y = jax.random.normal(ky, (B, input_dim), dtype=jnp.float32)
        w_fc = jax.random.normal(kw1, (2 * dim, input_dim),
                                 dtype=jnp.float32) / jnp.sqrt(input_dim)
        b_fc = jax.random.normal(kb1, (2 * dim,), dtype=jnp.float32) * 0.01
        w_out = jax.random.normal(kw2, (output_dim, dim),
                                  dtype=jnp.float32) / jnp.sqrt(dim)
        b_out = jax.random.normal(kb2, (output_dim,), dtype=jnp.float32) * 0.01
        return x, y, w_fc, b_fc, w_out, b_out

    k1, k2 = jax.random.split(jax.random.PRNGKey(0))

    # Case 1: fused gamma/beta dot (dim % 128 == 0), default bf16 output.
    B, input_dim, dim, output_dim = 48, 128, 128, 16
    x, y, w_fc, b_fc, w_out, b_out = make_case(k1, B, input_dim, dim, output_dim)
    params = prepare_film_params(w_fc, b_fc, w_out, b_out)
    out = jax.block_until_ready(film_forward(x, y, params, x_film=False))
    assert out.shape == (B, output_dim), out.shape
    out_f32 = out.astype(jnp.float32)
    ref_m = _reference_matched(x, y, w_fc, b_fc, w_out, b_out, x_film=False)
    assert jnp.allclose(out_f32, ref_m, atol=1.5e-1, rtol=5e-2), \
        float(jnp.max(jnp.abs(out_f32 - ref_m)))
    ref_f = _reference_f32(x, y, w_fc, b_fc, w_out, b_out, x_film=False)
    assert jnp.allclose(out_f32, ref_f, atol=5e-1, rtol=1e-1), \
        float(jnp.max(jnp.abs(out_f32 - ref_f)))

    # Case 2: split gamma/beta dots (dim not 128-aligned), f32 output, x_film=True.
    B2, input_dim2, dim2, output_dim2 = 16, 32, 32, 16
    x2, y2, w_fc2, b_fc2, w_out2, b_out2 = make_case(
        k2, B2, input_dim2, dim2, output_dim2)
    params2 = prepare_film_params(w_fc2, b_fc2, w_out2, b_out2)
    out2 = jax.block_until_ready(
        film_forward(x2, y2, params2, x_film=True, out_dtype=jnp.float32))
    assert out2.shape == (B2, output_dim2), out2.shape
    ref_m2 = _reference_matched(x2, y2, w_fc2, b_fc2, w_out2, b_out2, x_film=True)
    assert jnp.allclose(out2, ref_m2, atol=2e-2, rtol=2e-2), \
        float(jnp.max(jnp.abs(out2 - ref_m2)))
    ref_f2 = _reference_f32(x2, y2, w_fc2, b_fc2, w_out2, b_out2, x_film=True)
    assert jnp.allclose(out2, ref_f2, atol=3e-1, rtol=1e-1), \
        float(jnp.max(jnp.abs(out2 - ref_f2)))

    print("KERNEL_OK")
</pallas_src>

<mosaic_0001>
module attributes {stable_mosaic.version = 11 : i64} {
  func.func @_film_kernel_fused(%arg0: i32, %arg1: memref<24x128xbf16, #tpu.memory_space<vmem>>, %arg2: memref<24x128xf32, #tpu.memory_space<vmem>>, %arg3: memref<128x256xbf16, #tpu.memory_space<vmem>>, %arg4: memref<1x256xf32, #tpu.memory_space<vmem>>, %arg5: memref<128x128xbf16, #tpu.memory_space<vmem>>, %arg6: memref<1x128xf32, #tpu.memory_space<vmem>>, %arg7: memref<24x128xbf16, #tpu.memory_space<vmem>>) attributes {dimension_semantics = [#tpu.dimension_semantics<parallel>], iteration_bounds = array<i64: 2>, scalar_prefetch = 0 : i64, scratch_operands = 0 : i64, tpu.core_type = #tpu.core_type<tc>, window_params = [{transform_indices = @transform_0, window_bounds = array<i64: 24, 128>}, {transform_indices = @transform_1, window_bounds = array<i64: 24, 128>}, {pipeline_mode = #tpu.pipeline_mode<synchronous>, transform_indices = @transform_2, window_bounds = array<i64: 128, 256>}, {pipeline_mode = #tpu.pipeline_mode<synchronous>, transform_indices = @transform_3, window_bounds = array<i64: 1, 256>}, {pipeline_mode = #tpu.pipeline_mode<synchronous>, transform_indices = @transform_4, window_bounds = array<i64: 128, 128>}, {pipeline_mode = #tpu.pipeline_mode<synchronous>, transform_indices = @transform_5, window_bounds = array<i64: 1, 128>}, {transform_indices = @transform_6, window_bounds = array<i64: 24, 128>}]} {
    %c0 = arith.constant 0 : index
    %c0_0 = arith.constant 0 : index
    %0 = vector.load %arg1[%c0, %c0_0] : memref<24x128xbf16, #tpu.memory_space<vmem>>, vector<24x128xbf16>
    %c0_1 = arith.constant 0 : index
    %c0_2 = arith.constant 0 : index
    %1 = vector.load %arg3[%c0_1, %c0_2] : memref<128x256xbf16, #tpu.memory_space<vmem>>, vector<128x256xbf16>
    %cst = arith.constant dense<0.000000e+00> : vector<24x256xf32>
    %2 = tpu.matmul %0, %1, %cst {dimension_numbers = #tpu.dot_dimension_numbers<[1], [0], [0], [1], [0, 0, 1, 1], [], []>} : vector<24x128xbf16>, vector<128x256xbf16>, vector<24x256xf32> -> vector<24x256xf32>
    %c0_3 = arith.constant 0 : index
    %c0_4 = arith.constant 0 : index
    %3 = vector.load %arg4[%c0_3, %c0_4] : memref<1x256xf32, #tpu.memory_space<vmem>>, vector<1x256xf32>
    %4 = vector.broadcast %3 : vector<1x256xf32> to vector<24x256xf32>
    %5 = arith.addf %2, %4 : vector<24x256xf32>
    %6 = vector.extract_strided_slice %5 {offsets = [0, 0], sizes = [24, 128], strides = [1, 1]} : vector<24x256xf32> to vector<24x128xf32>
    %7 = vector.extract_strided_slice %5 {offsets = [0, 128], sizes = [24, 128], strides = [1, 1]} : vector<24x256xf32> to vector<24x128xf32>
    %c0_5 = arith.constant 0 : index
    %c0_6 = arith.constant 0 : index
    %8 = vector.load %arg2[%c0_5, %c0_6] : memref<24x128xf32, #tpu.memory_space<vmem>>, vector<24x128xf32>
    %9 = arith.mulf %6, %8 : vector<24x128xf32>
    %10 = arith.addf %9, %7 : vector<24x128xf32>
    %11 = arith.truncf %10 : vector<24x128xf32> to vector<24x128xbf16>
    %c0_7 = arith.constant 0 : index
    %c0_8 = arith.constant 0 : index
    %12 = vector.load %arg5[%c0_7, %c0_8] : memref<128x128xbf16, #tpu.memory_space<vmem>>, vector<128x128xbf16>
    %cst_9 = arith.constant dense<0.000000e+00> : vector<24x128xf32>
    %13 = tpu.matmul %11, %12, %cst_9 {dimension_numbers = #tpu.dot_dimension_numbers<[1], [0], [0], [1], [0, 0, 1, 1], [], []>} : vector<24x128xbf16>, vector<128x128xbf16>, vector<24x128xf32> -> vector<24x128xf32>
    %c0_10 = arith.constant 0 : index
    %c0_11 = arith.constant 0 : index
    %14 = vector.load %arg6[%c0_10, %c0_11] : memref<1x128xf32, #tpu.memory_space<vmem>>, vector<1x128xf32>
    %15 = vector.broadcast %14 : vector<1x128xf32> to vector<24x128xf32>
    %16 = arith.addf %13, %15 : vector<24x128xf32>
    %17 = arith.truncf %16 : vector<24x128xf32> to vector<24x128xbf16>
    %c0_12 = arith.constant 0 : index
    %c0_13 = arith.constant 0 : index
    %18 = vector.load %arg7[%c0_12, %c0_13] : memref<24x128xbf16, #tpu.memory_space<vmem>>, vector<24x128xbf16>
    tpu.vector_store %arg7[%c0_12, %c0_13], %17 {strides = array<i32>} : memref<24x128xbf16, #tpu.memory_space<vmem>>, vector<24x128xbf16>,
    return
  }
  func.func @transform_0(%arg0: i32) -> (i32, i32) {
    %c0_i32 = arith.constant 0 : i32
    %c0_i32_0 = arith.constant 0 : i32
    return %arg0, %c0_i32 : i32, i32
  }
  func.func @transform_1(%arg0: i32) -> (i32, i32) {
    %c0_i32 = arith.constant 0 : i32
    %c0_i32_0 = arith.constant 0 : i32
    return %arg0, %c0_i32 : i32, i32
  }
  func.func @transform_2(%arg0: i32) -> (i32, i32) {
    %c0_i32 = arith.constant 0 : i32
    %c0_i32_0 = arith.constant 0 : i32
    %c0_i32_1 = arith.constant 0 : i32
    return %c0_i32, %c0_i32_0 : i32, i32
  }
  func.func @transform_3(%arg0: i32) -> (i32, i32) {
    %c0_i32 = arith.constant 0 : i32
    %c0_i32_0 = arith.constant 0 : i32
    %c0_i32_1 = arith.constant 0 : i32
    return %c0_i32, %c0_i32_0 : i32, i32
  }
  func.func @transform_4(%arg0: i32) -> (i32, i32) {
    %c0_i32 = arith.constant 0 : i32
    %c0_i32_0 = arith.constant 0 : i32
    %c0_i32_1 = arith.constant 0 : i32
    return %c0_i32, %c0_i32_0 : i32, i32
  }
  func.func @transform_5(%arg0: i32) -> (i32, i32) {
    %c0_i32 = arith.constant 0 : i32
    %c0_i32_0 = arith.constant 0 : i32
    %c0_i32_1 = arith.constant 0 : i32
    return %c0_i32, %c0_i32_0 : i32, i32
  }
  func.func @transform_6(%arg0: i32) -> (i32, i32) {
    %c0_i32 = arith.constant 0 : i32
    %c0_i32_0 = arith.constant 0 : i32
    return %arg0, %c0_i32 : i32, i32
  }
}

</mosaic_0001>

<llo_original>
// kernel: tpu_custom_call.1
$region0: #{tpu_custom_call.1}
  #allocation0 [shape = 'u32[]', space=smem, size = 0x4, offset = 0x4, fixed_abs, tag = 'smem constant byte address 0x4 - core index']
  #allocation1 [shape = 'u32[72,128]{1,0:T(1,128)}', space=vmem, size = 0x9000, scoped, tag = 'internal scratch']
  %s0 = inlined_call_operand.hbm [shape: bf16[48,128], index: 0, kind: input, shape index: {}]
  %s1 = inlined_call_operand.hbm [shape: f32[48,128], index: 1, kind: input, shape index: {}]
  %s2 = inlined_call_operand.hbm [shape: bf16[128,256], index: 2, kind: input, shape index: {}]
  %s3 = inlined_call_operand.vmem [shape: f32[1,256], index: 3, kind: input, shape index: {}]
  %s4 = inlined_call_operand.hbm [shape: bf16[128,128], index: 4, kind: input, shape index: {}]
  %s5 = inlined_call_operand.vmem [shape: f32[1,128], index: 5, kind: input, shape index: {}]
  %s6 = inlined_call_operand.hbm [shape: bf16[48,128], index: 6, kind: output, shape index: {}]
  %s7 = sld [smem:[#allocation0]]
  $region73: #{tpu_custom_call.1} parent=0
    _
  %s9 = ssub.s32 1, %s7
  %s10 = scalar_select 0, %s9, %s7
  $region1: #{tpu_custom_call.1} parent=0
    #allocation2 [shape = 'u8[12288]{0}', space=vmem, size = 0x3000, scoped, tag = 'input window, operand 0']
    #allocation3 [shape = 's32[2]{0}', space=sflag, size = 0x8, scoped, tag = 'scoped memory for tpu_custom_call.1']
    #allocation4 [shape = 's32[2]{0}', space=sflag, size = 0x8, scoped, tag = 'scoped memory for tpu_custom_call.1']
    #allocation5 [shape = 'u8[24576]{0}', space=vmem, size = 0x6000, scoped, tag = 'input window, operand 1']
    #allocation6 [shape = 's32[2]{0}', space=sflag, size = 0x8, scoped, tag = 'scoped memory for tpu_custom_call.1']
    #allocation7 [shape = 'u8[65536]{0}', space=vmem, size = 0x10000, scoped, tag = 'input window, operand 2, single buffered']
    #allocation8 [shape = 'u8[32768]{0}', space=vmem, size = 0x8000, scoped, tag = 'input window, operand 4, single buffered']
    #allocation9 [shape = 's32[1]{0}', space=sflag, size = 0x4, scoped, tag = 'scoped memory for tpu_custom_call.1']
    #allocation10 [shape = 'u8[12288]{0}', space=vmem, size = 0x3000, scoped, tag = 'output window, operand 0']
    %11 = vsyncpa [#allocation3], 0
    %s12 = scalar_lea.sflag [#allocation3], 1
    %13 = vsyncpa %s12, 0
    %14 = vsyncpa [#allocation6], 0
    %s15 = scalar_lea.sflag [#allocation6], 1
    %16 = vsyncpa %s15, 0
    %17 = vsyncpa [#allocation9], 0
    %18 = vsyncpa [#allocation4], 0
    %s19 = scalar_lea.sflag [#allocation4], 1
    %20 = vsyncpa %s19, 0
    loop: start=0, step=1, limit=4
    $region2: #{tpu_custom_call.1} parent=1 // loop_pre_header
      _
    $region3: #{tpu_custom_call.1} parent=1 // loop_header
      %s22 = sphi 0, %s26
      %p23 = scmp.ge.s32.totalorder %s22, 4
      %s32 = sphi 0, %s34
      %s35 = sphi 0, %s32
      %s36 = sphi 0, %s35
      %s52 = sphi 0, %s36
      %s58 = sphi 0, %s60
      %s61 = sphi 0, %s58
      %s62 = sphi 0, %s61
      %s78 = sphi 0, %s62
      %s82 = sphi 0, %s82
      %s84 = sphi 0, %s82
      %s85 = sphi 0, %s84
      %s99 = sphi 0, %s85
      %s103 = sphi 0, %s103
      %s105 = sphi 0, %s103
      %s106 = sphi 0, %s105
      %s120 = sphi 0, %s106
      %s124 = sphi 0, %s124
      %s126 = sphi 0, %s124
      %s127 = sphi 0, %s126
      %s141 = sphi 0, %s127
      %s145 = sphi 0, %s145
      %s147 = sphi 0, %s145
      %s148 = sphi 0, %s147
      %s162 = sphi 0, %s148
      %s168 = sphi 0, %s170
      %s171 = sphi 0, %s168
      %s172 = sphi 0, %s171
      %s188 = sphi 0, %s172
    $region4: #{tpu_custom_call.1} parent=1 // loop_header_branch
      %25 = sbr.rel (%p23) target = $region8
    $region5: #{tpu_custom_call.1} parent=1 // loop_body
      %s27 = ssub.s32 %s22, 1
      %s28 = ssub.s32 %s22, 2
      %s29 = sadd.s32 %s22, 1
      %s30 = ssub.s32 %s22, %s29
      %p31 = scmp.eq.s32.totalorder %s30, 0
      %s33 = sadd.s32 %s32, 1
      %s34 = scalar_select %p31, %s32, %s33
      %p37 = pneg %p31
      %p38 = scmp.eq.s32.totalorder %s22, 1
      %p39 = por %p37, %p38
      %p40 = scmp.ne.s32.totalorder %s32, %s35
      %p41 = scmp.eq.s32.totalorder %s22, 0
      %p42 = por %p40, %p41
      %p43 = scmp.ne.s32.totalorder %s32, %s35
      %p44 = scmp.eq.s32.totalorder %s27, 1
      %p45 = por %p43, %p44
      %p46 = scmp.ne.s32.totalorder %s35, %s36
      %p47 = scmp.eq.s32.totalorder %s27, 0
      %p48 = por %p46, %p47
      %p49 = scmp.ne.s32.totalorder %s35, %s36
      %p50 = scmp.eq.s32.totalorder %s28, 1
      %p51 = por %p49, %p50
      %p53 = scmp.ne.s32.totalorder %s36, %s52
      %p54 = scmp.eq.s32.totalorder %s28, 0
      %p55 = por %p53, %p54
      %s56 = ssub.s32 %s22, %s29
      %p57 = scmp.eq.s32.totalorder %s56, 0
      %s59 = sadd.s32 %s58, 1
      %s60 = scalar_select %p57, %s58, %s59
      %p63 = pneg %p57
      %p64 = scmp.eq.s32.totalorder %s22, 1
      %p65 = por %p63, %p64
      %p66 = scmp.ne.s32.totalorder %s58, %s61
      %p67 = scmp.eq.s32.totalorder %s22, 0
      %p68 = por %p66, %p67
      %p69 = scmp.ne.s32.totalorder %s58, %s61
      %p70 = scmp.eq.s32.totalorder %s27, 1
      %p71 = por %p69, %p70
      %p72 = scmp.ne.s32.totalorder %s61, %s62
      %p73 = scmp.eq.s32.totalorder %s27, 0
      %p74 = por %p72, %p73
      %p75 = scmp.ne.s32.totalorder %s61, %s62
      %p76 = scmp.eq.s32.totalorder %s28, 1
      %p77 = por %p75, %p76
      %p79 = scmp.ne.s32.totalorder %s62, %s78
      %p80 = scmp.eq.s32.totalorder %s28, 0
      %p81 = por %p79, %p80
      %s83 = sadd.s32 %s82, 1
      %p86 = scmp.eq.s32.totalorder %s22, 1
      %p87 = scmp.ne.s32.totalorder %s82, %s84
      %p88 = scmp.eq.s32.totalorder %s22, 0
      %p89 = por %p87, %p88
      %p90 = scmp.ne.s32.totalorder %s82, %s84
      %p91 = scmp.eq.s32.totalorder %s27, 1
      %p92 = por %p90, %p91
      %p93 = scmp.ne.s32.totalorder %s84, %s85
      %p94 = scmp.eq.s32.totalorder %s27, 0
      %p95 = por %p93, %p94
      %p96 = scmp.ne.s32.totalorder %s84, %s85
      %p97 = scmp.eq.s32.totalorder %s28, 1
      %p98 = por %p96, %p97
      %p100 = scmp.ne.s32.totalorder %s85, %s99
      %p101 = scmp.eq.s32.totalorder %s28, 0
      %p102 = por %p100, %p101
      %s104 = sadd.s32 %s103, 1
      %p107 = scmp.eq.s32.totalorder %s22, 1
      %p108 = scmp.ne.s32.totalorder %s103, %s105
      %p109 = scmp.eq.s32.totalorder %s22, 0
      %p110 = por %p108, %p109
      %p111 = scmp.ne.s32.totalorder %s103, %s105
      %p112 = scmp.eq.s32.totalorder %s27, 1
      %p113 = por %p111, %p112
      %p114 = scmp.ne.s32.totalorder %s105, %s106
      %p115 = scmp.eq.s32.totalorder %s27, 0
      %p116 = por %p114, %p115
      %p117 = scmp.ne.s32.totalorder %s105, %s106
      %p118 = scmp.eq.s32.totalorder %s28, 1
      %p119 = por %p117, %p118
      %p121 = scmp.ne.s32.totalorder %s106, %s120
      %p122 = scmp.eq.s32.totalorder %s28, 0
      %p123 = por %p121, %p122
      %s125 = sadd.s32 %s124, 1
      %p128 = scmp.eq.s32.totalorder %s22, 1
      %p129 = scmp.ne.s32.totalorder %s124, %s126
      %p130 = scmp.eq.s32.totalorder %s22, 0
      %p131 = por %p129, %p130
      %p132 = scmp.ne.s32.totalorder %s124, %s126
      %p133 = scmp.eq.s32.totalorder %s27, 1
      %p134 = por %p132, %p133
      %p135 = scmp.ne.s32.totalorder %s126, %s127
      %p136 = scmp.eq.s32.totalorder %s27, 0
      %p137 = por %p135, %p136
      %p138 = scmp.ne.s32.totalorder %s126, %s127
      %p139 = scmp.eq.s32.totalorder %s28, 1
      %p140 = por %p138, %p139
      %p142 = scmp.ne.s32.totalorder %s127, %s141
      %p143 = scmp.eq.s32.totalorder %s28, 0
      %p144 = por %p142, %p143
      %s146 = sadd.s32 %s145, 1
      %p149 = scmp.eq.s32.totalorder %s22, 1
      %p150 = scmp.ne.s32.totalorder %s145, %s147
      %p151 = scmp.eq.s32.totalorder %s22, 0
      %p152 = por %p150, %p151
      %p153 = scmp.ne.s32.totalorder %s145, %s147
      %p154 = scmp.eq.s32.totalorder %s27, 1
      %p155 = por %p153, %p154
      %p156 = scmp.ne.s32.totalorder %s147, %s148
      %p157 = scmp.eq.s32.totalorder %s27, 0
      %p158 = por %p156, %p157
      %p159 = scmp.ne.s32.totalorder %s147, %s148
      %p160 = scmp.eq.s32.totalorder %s28, 1
      %p161 = por %p159, %p160
      %p163 = scmp.ne.s32.totalorder %s148, %s162
      %p164 = scmp.eq.s32.totalorder %s28, 0
      %p165 = por %p163, %p164
      %s166 = ssub.s32 %s22, %s29
      %p167 = scmp.eq.s32.totalorder %s166, 0
      %s169 = sadd.s32 %s168, 1
      %s170 = scalar_select %p167, %s168, %s169
      %p173 = pneg %p167
      %p174 = scmp.eq.s32.totalorder %s22, 1
      %p175 = por %p173, %p174
      %p176 = scmp.ne.s32.totalorder %s168, %s171
      %p177 = scmp.eq.s32.totalorder %s22, 0
      %p178 = por %p176, %p177
      %p179 = scmp.ne.s32.totalorder %s168, %s171
      %p180 = scmp.eq.s32.totalorder %s27, 1
      %p181 = por %p179, %p180
      %p182 = scmp.ne.s32.totalorder %s171, %s172
      %p183 = scmp.eq.s32.totalorder %s27, 0
      %p184 = por %p182, %p183
      %p185 = scmp.ne.s32.totalorder %s171, %s172
      %p186 = scmp.eq.s32.totalorder %s28, 1
      %p187 = por %p185, %p186
      %p189 = scmp.ne.s32.totalorder %s172, %s188
      %p190 = scmp.eq.s32.totalorder %s28, 0
      %p191 = por %p189, %p190
      %p192 = scmp.le.s32.totalorder 1, %s22
      %p193 = scmp.lt.s32.totalorder %s22, 3
      %p194 = pnand %p192, %p193
      %p195 = pneg %p194
      // Predicated region
      $region9: #{tpu_custom_call.1} parent=5 // pred_check
        _
      $region10: #{tpu_custom_call.1} parent=5 // pred_check_branch
        %197 = sbr.rel (%p194) target = $region12
      $region11: #{tpu_custom_call.1} parent=5 // pred_region
        %s198 = ssub.s32 %s22, 1
        // Predicated region
        $region13: #{tpu_custom_call.1} parent=11 // pred_check
          %p199 = pneg %p95
        $region14: #{tpu_custom_call.1} parent=11 // pred_check_branch
          %201 = sbr.rel (%p199) target = $region16
        $region15: #{tpu_custom_call.1} parent=11 // pred_region
          %203 = vsyncadd [#allocation6], 0
          %s204 = sshll.u32 %s2, 4
          %s205 = int_to_ptr.hbm [resolvable:$true] %s204
          %s206 = sshll.u32 [#allocation7], 4
          %s207 = int_to_ptr.vmem [resolvable:$true] %s206
          %212 = dma.hbm_to_vmem [thread:$0]  %s205, 2048, %s207, [#allocation6], 128, 128, 8
        $region16: #{tpu_custom_call.1} parent=11 // pred_fallthru
          _
        // Predicated region
        $region17: #{tpu_custom_call.1} parent=11 // pred_check
          %p213 = pneg %p116
        $region18: #{tpu_custom_call.1} parent=11 // pred_check_branch
          %215 = sbr.rel (%p213) target = $region20
        $region19: #{tpu_custom_call.1} parent=11 // pred_region
          _
        $region20: #{tpu_custom_call.1} parent=11 // pred_fallthru
          _
        // Predicated region
        $region21: #{tpu_custom_call.1} parent=11 // pred_check
          %p216 = pneg %p137
        $region22: #{tpu_custom_call.1} parent=11 // pred_check_branch
          %218 = sbr.rel (%p216) target = $region24
        $region23: #{tpu_custom_call.1} parent=11 // pred_region
          %220 = vsyncadd [#allocation9], 0
          %s221 = sshll.u32 %s4, 4
          %s222 = int_to_ptr.hbm [resolvable:$true] %s221
          %s223 = sshll.u32 [#allocation8], 4
          %s224 = int_to_ptr.vmem [resolvable:$true] %s223
          %229 = dma.hbm_to_vmem [thread:$0]  %s222, 1024, %s224, [#allocation9], 64, 64, 4
        $region24: #{tpu_custom_call.1} parent=11 // pred_fallthru
          _
        // Predicated region
        $region25: #{tpu_custom_call.1} parent=11 // pred_check
          %p230 = pneg %p158
        $region26: #{tpu_custom_call.1} parent=11 // pred_check_branch
          %232 = sbr.rel (%p230) target = $region28
        $region27: #{tpu_custom_call.1} parent=11 // pred_region
          _
        $region28: #{tpu_custom_call.1} parent=11 // pred_fallthru
          _
      $region12: #{tpu_custom_call.1} parent=5 // pred_fallthru
        _
      %p233 = scmp.lt.s32.totalorder %s22, 2
      // Predicated region
      $region29: #{tpu_custom_call.1} parent=5 // pred_check
        %p234 = pneg %p233
      $region30: #{tpu_custom_call.1} parent=5 // pred_check_branch
        %236 = sbr.rel (%p234) target = $region32
      $region31: #{tpu_custom_call.1} parent=5 // pred_region
        // Predicated region
        $region33: #{tpu_custom_call.1} parent=31 // pred_check
          %p237 = pneg %p42
        $region34: #{tpu_custom_call.1} parent=31 // pred_check_branch
          %239 = sbr.rel (%p237) target = $region36
        $region35: #{tpu_custom_call.1} parent=31 // pred_region
          %s240 = sand.u32 %s32, 1
          %s241 = scalar_lea.sflag [#allocation3], %s240
          %s242 = sand.u32 %s32, 1
          %s243 = smul.addr %s242, 12
          %s244 = scalar_lea.vmem [#allocation2], %s243
          %s245 = smul.u32 3, %s22
          %247 = vsyncadd %s241, 0
          %s248 = smul.addr %s245, 4
          %s249 = scalar_lea.hbm %s0, %s248
          %s250 = sshll.u32 %s249, 4
          %s251 = int_to_ptr.hbm [resolvable:$true] %s250
          %s252 = sshll.u32 %s244, 4
          %s253 = int_to_ptr.vmem [resolvable:$true] %s252
          %258 = dma.hbm_to_vmem [thread:$0]  %s251, 192, %s253, %s241, 64, 64, 4
        $region36: #{tpu_custom_call.1} parent=31 // pred_fallthru
          _
        // Predicated region
        $region37: #{tpu_custom_call.1} parent=31 // pred_check
          %p259 = pneg %p68
        $region38: #{tpu_custom_call.1} parent=31 // pred_check_branch
          %261 = sbr.rel (%p259) target = $region40
        $region39: #{tpu_custom_call.1} parent=31 // pred_region
          %s262 = sand.u32 %s22, 1
          %s263 = scalar_lea.sflag [#allocation6], %s262
          %s264 = sand.u32 %s58, 1
          %s265 = smul.addr %s264, 24
          %s266 = scalar_lea.vmem [#allocation5], %s265
          %s267 = smul.u32 3, %s22
          %269 = vsyncadd %s263, 0
          %s270 = smul.addr %s267, 8
          %s271 = scalar_lea.hbm %s1, %s270
          %s272 = sshll.u32 %s271, 4
          %s273 = int_to_ptr.hbm [resolvable:$true] %s272
          %s274 = sshll.u32 %s266, 4
          %s275 = int_to_ptr.vmem [resolvable:$true] %s274
          %280 = dma.hbm_to_vmem [thread:$0]  %s273, 384, %s275, %s263, 128, 128, 8
        $region40: #{tpu_custom_call.1} parent=31 // pred_fallthru
          _
      $region32: #{tpu_custom_call.1} parent=5 // pred_fallthru
        _
      %p281 = scmp.le.s32.totalorder 1, %s22
      %p282 = scmp.lt.s32.totalorder %s22, 3
      %p283 = pnand %p281, %p282
      %p284 = pneg %p283
      // Predicated region
      $region41: #{tpu_custom_call.1} parent=5 // pred_check
        _
      $region42: #{tpu_custom_call.1} parent=5 // pred_check_branch
        %286 = sbr.rel (%p283) target = $region44
      $region43: #{tpu_custom_call.1} parent=5 // pred_region
        %s287 = ssub.s32 %s22, 1
        %s288 = sand.u32 %s35, 1
        %s289 = scalar_lea.sflag [#allocation3], %s288
        %s290 = sand.u32 %s35, 1
        %s291 = smul.addr %s290, 12
        %s292 = scalar_lea.vmem [#allocation2], %s291
        // Predicated region
        $region45: #{tpu_custom_call.1} parent=43 // pred_check
          %p293 = pneg %p48
        $region46: #{tpu_custom_call.1} parent=43 // pred_check_branch
          %295 = sbr.rel (%p293) target = $region48
        $region47: #{tpu_custom_call.1} parent=43 // pred_region
          %297 = dma.done %s289, 192
        $region48: #{tpu_custom_call.1} parent=43 // pred_fallthru
          _
        %s298 = sand.u32 %s27, 1
        %s299 = scalar_lea.sflag [#allocation6], %s298
        %s300 = sand.u32 %s61, 1
        %s301 = smul.addr %s300, 24
        %s302 = scalar_lea.vmem [#allocation5], %s301
        // Predicated region
        $region49: #{tpu_custom_call.1} parent=43 // pred_check
          %p303 = pneg %p74
        $region50: #{tpu_custom_call.1} parent=43 // pred_check_branch
          %305 = sbr.rel (%p303) target = $region52
        $region51: #{tpu_custom_call.1} parent=43 // pred_region
          %307 = dma.done %s299, 384
        $region52: #{tpu_custom_call.1} parent=43 // pred_fallthru
          _
        // Predicated region
        $region53: #{tpu_custom_call.1} parent=43 // pred_check
          %p308 = pneg %p95
        $region54: #{tpu_custom_call.1} parent=43 // pred_check_branch
          %310 = sbr.rel (%p308) target = $region56
        $region55: #{tpu_custom_call.1} parent=43 // pred_region
          %312 = dma.done [#allocation6], 2048
        $region56: #{tpu_custom_call.1} parent=43 // pred_fallthru
          _
        // Predicated region
        $region57: #{tpu_custom_call.1} parent=43 // pred_check
          %p313 = pneg %p137
        $region58: #{tpu_custom_call.1} parent=43 // pred_check_branch
          %315 = sbr.rel (%p313) target = $region60
        $region59: #{tpu_custom_call.1} parent=43 // pred_region
          %317 = dma.done [#allocation9], 1024
        $region60: #{tpu_custom_call.1} parent=43 // pred_fallthru
          _
        %s318 = sand.u32 %s35, 1
        %s319 = scalar_lea.sflag [#allocation3], %s318
        %s320 = sand.u32 %s35, 1
        %s321 = smul.addr %s320, 12
        %s322 = scalar_lea.vmem [#allocation2], %s321
        %p323 = pneg %p48
        %p324 = pneg %p45
        %s325 = sand.u32 %s27, 1
        %s326 = scalar_lea.sflag [#allocation6], %s325
        %s327 = sand.u32 %s61, 1
        %s328 = smul.addr %s327, 24
        %s329 = scalar_lea.vmem [#allocation5], %s328
        %p330 = pneg %p74
        %p331 = pneg %p71
        %p332 = pneg %p95
        %p333 = pneg %p92
        %p334 = pneg %p116
        %p335 = pneg %p113
        %p336 = pneg %p137
        %p337 = pneg %p134
        %p338 = pneg %p158
        %p339 = pneg %p155
        %p340 = pneg %p184
        %p341 = pneg %p181
        %s342 = sand.u32 %s171, 1
        %s343 = scalar_lea.sflag [#allocation4], %s342
        %s344 = sand.u32 %s171, 1
        %s345 = smul.addr %s344, 12
        %s346 = scalar_lea.vmem [#allocation10], %s345
        %s347 = smul.u32 3, %s27
        %s348 = smul.u32 3, %s27
        %s349 = smul.u32 3, %s27
        %v350 = vld [vmem:[%s292] sm:$0xf]
        %v351 = vld [vmem:[%s292 + $0x4] sm:$0xf]
        %v352 = vld [vmem:[%s292 + $0x8] sm:$0xf]
        %v353 = vld [vmem:[#allocation7] sm:$0xff]
        %v354 = vld [vmem:[#allocation7 + $0x8] sm:$0xff]
        %v355 = vld [vmem:[#allocation7 + $0x10] sm:$0xff]
        %v356 = vld [vmem:[#allocation7 + $0x18] sm:$0xff]
        %v357 = vld [vmem:[#allocation7 + $0x20] sm:$0xff]
        %v358 = vld [vmem:[#allocation7 + $0x28] sm:$0xff]
        %v359 = vld [vmem:[#allocation7 + $0x30] sm:$0xff]
        %v360 = vld [vmem:[#allocation7 + $0x38] sm:$0xff]
        %v361 = vld [vmem:[#allocation7 + $0x40] sm:$0xff]
        %v362 = vld [vmem:[#allocation7 + $0x48] sm:$0xff]
        %v363 = vld [vmem:[#allocation7 + $0x50] sm:$0xff]
        %v364 = vld [vmem:[#allocation7 + $0x58] sm:$0xff]
        %v365 = vld [vmem:[#allocation7 + $0x60] sm:$0xff]
        %v366 = vld [vmem:[#allocation7 + $0x68] sm:$0xff]
        %v367 = vld [vmem:[#allocation7 + $0x70] sm:$0xff]
        %v368 = vld [vmem:[#allocation7 + $0x78] sm:$0xff]
        %v369 = vld [vmem:[%s3] sm:$0x3]
        %v371 = vperm.slane %v369, 0
        %v372 = vperm.slane %v369, 1
        %v378 = vunpack.c.l.b16 %v350
        %v379 = vunpack.c.l.b16 %v351
        %v380 = vunpack.c.l.b16 %v352
        %v381 = vpack.c.b16 %v379, %v378
        %v382 = vpack.c.b16 %v380, %v380
        %v401 = vunpack.c.l.b16 %v353
        %v402 = vunpack.c.h.b16 %v353
        %v403 = vunpack.c.l.b16 %v354
        %v404 = vunpack.c.h.b16 %v354
        %v405 = vunpack.c.l.b16 %v355
        %v406 = vunpack.c.h.b16 %v355
        %v407 = vunpack.c.l.b16 %v356
        %v408 = vunpack.c.h.b16 %v356
        %v409 = vunpack.c.l.b16 %v357
        %v410 = vunpack.c.h.b16 %v357
        %v411 = vunpack.c.l.b16 %v358
        %v412 = vunpack.c.h.b16 %v358
        %v413 = vunpack.c.l.b16 %v359
        %v414 = vunpack.c.h.b16 %v359
        %v415 = vunpack.c.l.b16 %v360
        %v416 = vunpack.c.h.b16 %v360
        %v417 = vunpack.c.l.b16 %v361
        %v418 = vunpack.c.h.b16 %v361
        %v419 = vunpack.c.l.b16 %v362
        %v420 = vunpack.c.h.b16 %v362
        %v421 = vunpack.c.l.b16 %v363
        %v422 = vunpack.c.h.b16 %v363
        %v423 = vunpack.c.l.b16 %v364
        %v424 = vunpack.c.h.b16 %v364
        %v425 = vunpack.c.l.b16 %v365
        %v426 = vunpack.c.h.b16 %v365
        %v427 = vunpack.c.l.b16 %v366
        %v428 = vunpack.c.h.b16 %v366
        %v429 = vunpack.c.l.b16 %v367
        %v430 = vunpack.c.h.b16 %v367
        %v431 = vunpack.c.l.b16 %v368
        %v432 = vunpack.c.h.b16 %v368
        %v433 = vpack.c.b16 %v403, %v401
        %v434 = vpack.c.b16 %v404, %v402
        %v435 = vpack.c.b16 %v407, %v405
        %v436 = vpack.c.b16 %v408, %v406
        %v437 = vpack.c.b16 %v411, %v409
        %v438 = vpack.c.b16 %v412, %v410
        %v439 = vpack.c.b16 %v415, %v413
        %v440 = vpack.c.b16 %v416, %v414
        %v441 = vpack.c.b16 %v419, %v417
        %v442 = vpack.c.b16 %v420, %v418
        %v443 = vpack.c.b16 %v423, %v421
        %v444 = vpack.c.b16 %v424, %v422
        %v445 = vpack.c.b16 %v427, %v425
        %v446 = vpack.c.b16 %v428, %v426
        %v447 = vpack.c.b16 %v431, %v429
        %v448 = vpack.c.b16 %v432, %v430
        %465 = vmatpush.bf16.msra.mxu0 %v447
        %466 = vmatpush.bf16.msra.mxu0 %v445
        %467 = vmatpush.bf16.msra.mxu0 %v443
        %468 = vmatpush.bf16.msra.mxu0 %v441
        %469 = vmatpush.bf16.msra.mxu0 %v439
        %470 = vmatpush.bf16.msra.mxu0 %v437
        %471 = vmatpush.bf16.msra.mxu0 %v435
        %472 = vmatpush.bf16.msra.mxu0 %v433
        %473 = vmatmul.bf16.gmra.mxu0 %v381
        %v474 = vpop.f32.mrf.mxu0
        %v475 = vadd.f32 %v371, %v474
        %v476 = vpop.f32.mrf.mxu0
        %v477 = vadd.f32 %v371, %v476
        %478 = vmatmul.bf16.gmra.mxu0 %v382
        %v479 = vpop.f32.mrf.mxu0
        %v480 = vadd.f32 %v371, %v479
        %v481 = vpop.f32.mrf.mxu0
        %482 = vdwg.mxu0
        %483 = vmatpush.bf16.msra.mxu0 %v448
        %484 = vmatpush.bf16.msra.mxu0 %v446
        %485 = vmatpush.bf16.msra.mxu0 %v444
        %486 = vmatpush.bf16.msra.mxu0 %v442
        %487 = vmatpush.bf16.msra.mxu0 %v440
        %488 = vmatpush.bf16.msra.mxu0 %v438
        %489 = vmatpush.bf16.msra.mxu0 %v436
        %490 = vmatpush.bf16.msra.mxu0 %v434
        %491 = vmatmul.bf16.gmra.mxu0 %v381
        %v492 = vpop.f32.mrf.mxu0
        %v493 = vadd.f32 %v372, %v492
        %v494 = vpop.f32.mrf.mxu0
        %v495 = vadd.f32 %v372, %v494
        %496 = vmatmul.bf16.gmra.mxu0 %v382
        %v497 = vpop.f32.mrf.mxu0
        %v498 = vadd.f32 %v372, %v497
        %v499 = vpop.f32.mrf.mxu0
        %500 = vdwg.mxu0
        %v501 = vld [vmem:[%s302] sm:$0xff]
        %v502 = vld [vmem:[%s302 + $0x8] sm:$0xff]
        %v503 = vld [vmem:[%s302 + $0x10] sm:$0xff]
        %v504 = vmul.f32 %v475, %v501
        %v505 = vmul.f32 %v477, %v502
        %v506 = vmul.f32 %v480, %v503
        %v507 = vadd.f32 %v504, %v493
        %v508 = vadd.f32 %v505, %v495
        %v509 = vadd.f32 %v506, %v498
        %v510 = vpack.c.bf16 %v508, %v507
        %v511 = vpack.c.bf16 %v509, %v509
        %v512 = vld [vmem:[#allocation8] sm:$0xf]
        %v513 = vld [vmem:[#allocation8 + $0x4] sm:$0xf]
        %v514 = vld [vmem:[#allocation8 + $0x8] sm:$0xf]
        %v515 = vld [vmem:[#allocation8 + $0xc] sm:$0xf]
        %v516 = vld [vmem:[#allocation8 + $0x10] sm:$0xf]
        %v517 = vld [vmem:[#allocation8 + $0x14] sm:$0xf]
        %v518 = vld [vmem:[#allocation8 + $0x18] sm:$0xf]
        %v519 = vld [vmem:[#allocation8 + $0x1c] sm:$0xf]
        %v520 = vld [vmem:[#allocation8 + $0x20] sm:$0xf]
        %v521 = vld [vmem:[#allocation8 + $0x24] sm:$0xf]
        %v522 = vld [vmem:[#allocation8 + $0x28] sm:$0xf]
        %v523 = vld [vmem:[#allocation8 + $0x2c] sm:$0xf]
        %v524 = vld [vmem:[#allocation8 + $0x30] sm:$0xf]
        %v525 = vld [vmem:[#allocation8 + $0x34] sm:$0xf]
        %v526 = vld [vmem:[#allocation8 + $0x38] sm:$0xf]
        %v527 = vld [vmem:[#allocation8 + $0x3c] sm:$0xf]
        %v528 = vld [vmem:[%s5] sm:$0x1]
        %v530 = vperm.slane %v528, 0
        %v548 = vunpack.c.l.b16 %v512
        %v549 = vunpack.c.l.b16 %v513
        %v550 = vunpack.c.l.b16 %v514
        %v551 = vunpack.c.l.b16 %v515
        %v552 = vunpack.c.l.b16 %v516
        %v553 = vunpack.c.l.b16 %v517
        %v554 = vunpack.c.l.b16 %v518
        %v555 = vunpack.c.l.b16 %v519
        %v556 = vunpack.c.l.b16 %v520
        %v557 = vunpack.c.l.b16 %v521
        %v558 = vunpack.c.l.b16 %v522
        %v559 = vunpack.c.l.b16 %v523
        %v560 = vunpack.c.l.b16 %v524
        %v561 = vunpack.c.l.b16 %v525
        %v562 = vunpack.c.l.b16 %v526
        %v563 = vunpack.c.l.b16 %v527
        %v564 = vpack.c.b16 %v549, %v548
        %v565 = vpack.c.b16 %v551, %v550
        %v566 = vpack.c.b16 %v553, %v552
        %v567 = vpack.c.b16 %v555, %v554
        %v568 = vpack.c.b16 %v557, %v556
        %v569 = vpack.c.b16 %v559, %v558
        %v570 = vpack.c.b16 %v561, %v560
        %v571 = vpack.c.b16 %v563, %v562
        %580 = vmatpush.bf16.msra.mxu0 %v571
        %581 = vmatpush.bf16.msra.mxu0 %v570
        %582 = vmatpush.bf16.msra.mxu0 %v569
        %583 = vmatpush.bf16.msra.mxu0 %v568
        %584 = vmatpush.bf16.msra.mxu0 %v567
        %585 = vmatpush.bf16.msra.mxu0 %v566
        %586 = vmatpush.bf16.msra.mxu0 %v565
        %587 = vmatpush.bf16.msra.mxu0 %v564
        %588 = vmatmul.bf16.gmra.mxu0 %v510
        %v589 = vpop.f32.mrf.mxu0
        %v590 = vadd.f32 %v530, %v589
        %v591 = vpop.f32.mrf.mxu0
        %v592 = vadd.f32 %v530, %v591
        %593 = vmatmul.bf16.gmra.mxu0 %v511
        %v594 = vpop.f32.mrf.mxu0
        %v595 = vadd.f32 %v530, %v594
        %v596 = vpop.f32.mrf.mxu0
        %597 = vdwg.mxu0
        %v598 = vpack.c.bf16 %v590, %v590
        %v599 = vpack.c.bf16 %v592, %v592
        %v600 = vpack.c.bf16 %v595, %v595
        %601 = vst [vmem:[%s346] sm:$0xf] %v598
        %602 = vst [vmem:[%s346 + $0x4] sm:$0xf] %v599
        %603 = vst [vmem:[%s346 + $0x8] sm:$0xf] %v600
        %s604 = sand.u32 %s171, 1
        %s605 = scalar_lea.sflag [#allocation4], %s604
        %s606 = sand.u32 %s171, 1
        %s607 = smul.addr %s606, 12
        %s608 = scalar_lea.vmem [#allocation10], %s607
        // Predicated region
        $region61: #{tpu_custom_call.1} parent=43 // pred_check
          %p609 = pneg %p181
        $region62: #{tpu_custom_call.1} parent=43 // pred_check_branch
          %611 = sbr.rel (%p609) target = $region64
        $region63: #{tpu_custom_call.1} parent=43 // pred_region
          %s612 = smul.u32 3, %s27
          %614 = vsyncadd %s605, 0
          %s615 = smul.addr %s612, 4
          %s616 = scalar_lea.hbm %s6, %s615
          %s617 = sshll.u32 %s608, 4
          %s618 = int_to_ptr.vmem [resolvable:$true] %s617
          %s619 = sshll.u32 %s616, 4
          %s620 = int_to_ptr.hbm [resolvable:$true] %s619
          %625 = dma.vmem_to_hbm [thread:$0]  %s618, 192, %s620, %s605, 64, 64, 4
        $region64: #{tpu_custom_call.1} parent=43 // pred_fallthru
          _
      $region44: #{tpu_custom_call.1} parent=5 // pred_fallthru
        _
      %p626 = scmp.le.s32.totalorder 2, %s22
      // Predicated region
      $region65: #{tpu_custom_call.1} parent=5 // pred_check
        %p627 = pneg %p626
      $region66: #{tpu_custom_call.1} parent=5 // pred_check_branch
        %629 = sbr.rel (%p627) target = $region68
      $region67: #{tpu_custom_call.1} parent=5 // pred_region
        %s630 = ssub.s32 %s22, 2
        // Predicated region
        $region69: #{tpu_custom_call.1} parent=67 // pred_check
          %p631 = pneg %p187
        $region70: #{tpu_custom_call.1} parent=67 // pred_check_branch
          %633 = sbr.rel (%p631) target = $region72
        $region71: #{tpu_custom_call.1} parent=67 // pred_region
          %s634 = sand.u32 %s172, 1
          %s635 = scalar_lea.sflag [#allocation4], %s634
          %s636 = sand.u32 %s172, 1
          %s637 = smul.addr %s636, 12
          %s638 = scalar_lea.vmem [#allocation10], %s637
          %640 = dma.done %s635, 192
        $region72: #{tpu_custom_call.1} parent=67 // pred_fallthru
          _
      $region68: #{tpu_custom_call.1} parent=5 // pred_fallthru
        _
    $region6: #{tpu_custom_call.1} parent=1 // loop_footer
      %s26 = sadd.s32 1, %s22
    $region7: #{tpu_custom_call.1} parent=1 // loop_footer_branch
      %21 = sbr.rel target = $region3
    $region8: #{tpu_custom_call.1} parent=1 // loop_exit
      _
    %641 = vsyncpa [#allocation3], 1
    %s642 = scalar_lea.sflag [#allocation3], 1
    %643 = vsyncpa %s642, 1
    %644 = vsyncpa [#allocation6], 1
    %s645 = scalar_lea.sflag [#allocation6], 1
    %646 = vsyncpa %s645, 1
    %647 = vsyncpa [#allocation9], 1
    %648 = vsyncpa [#allocation4], 1
    %s649 = scalar_lea.sflag [#allocation4], 1
    %650 = vsyncpa %s649, 1

</llo_original>
